<compile_context>
chip_gen: v7x
topology: tpu7x:2x2x1
jax: 0.10.0
libtpu: 0.0.40
codegen_flags: <defaults>
</compile_context>

<pallas_src>
import functools

import jax
import jax.numpy as jnp
from jax.experimental import pallas as pl
from jax.experimental.pallas import tpu as pltpu

_LANE = 128


def _cdiv(a, b):
    return -(-a // b)


def _sublane_multiple(dtype):
    # f32 -> 8, bf16 -> 16, int8/fp8 -> 32 (packed sublane tiling).
    return max(8, 32 // jnp.dtype(dtype).itemsize)


def _pick_width(n):
    """Lane-dense width for the flattened view.

    Prefer a width that also makes the row count a multiple of 8 (so the
    in-kernel sublane fold is a free reshape); otherwise any 128-multiple.
    """
    for w in (512, 256, 128):
        if n % (8 * w) == 0:
            return w
    for w in (512, 256, 128):
        if n % w == 0:
            return w
    return _LANE


def _chip_budget():
    """(target_block_bytes, vmem_limit_bytes) adapted to the chip generation."""
    try:
        info = pltpu.get_tpu_info()
        vmem = getattr(info, "vmem_capacity_bytes", None) or (64 * 1024 * 1024)
    except Exception:  # no TPU info available -> conservative (v7x-safe) plan
        vmem = 64 * 1024 * 1024
    if vmem >= 100 * 1024 * 1024:     # v5e / v6e: 128 MiB physical VMEM
        return 8 * 1024 * 1024, 96 * 1024 * 1024
    return 4 * 1024 * 1024, 48 * 1024 * 1024   # v7x: 64 MiB physical VMEM


# ---------------------------------------------------------------------------
# Kernels
# ---------------------------------------------------------------------------

def _mse_reduce_kernel(p_ref, t_ref, o_ref, *, rows, block_rows, nb, steps,
                       mask_tail, has_phantom):
    """Accumulate per-lane partial sums of squared differences.

    o_ref is an (8, width) f32 block, resident across the inner (reduction)
    grid axis; one such block per core on the outer (parallel) axis.
    """
    c = pl.program_id(0)
    i = pl.program_id(1)
    blk = c * steps + i
    width = o_ref.shape[-1]

    @pl.when(i == 0)
    def _():
        o_ref[...] = jnp.zeros_like(o_ref)

    def accumulate(masked):
        d = p_ref[...].astype(jnp.float32) - t_ref[...].astype(jnp.float32)
        if masked:
            # Only the last real block is ragged; zero its out-of-bounds rows.
            row = jax.lax.broadcasted_iota(jnp.int32, d.shape, 0)
            d = jnp.where(row < rows - blk * block_rows, d, 0.0)
        sq = d * d
        if block_rows % 8 == 0:
            # Fold (block_rows, width) -> (8, width): pure VPU adds.
            o_ref[...] += jnp.sum(sq.reshape(block_rows // 8, 8, width), axis=0)
        else:
            # Tiny single-block case (nb == 1) with rows not a multiple of 8:
            # fold into sublane row 0 via a full-tile select (no sub-tile store).
            s = jnp.sum(sq, axis=0, keepdims=True)                  # (1, width)
            rid = jax.lax.broadcasted_iota(jnp.int32, o_ref.shape, 0)
            o_ref[...] += jnp.where(rid == 0,
                                    jnp.broadcast_to(s, o_ref.shape),
                                    jnp.zeros(o_ref.shape, jnp.float32))

    if mask_tail:
        @pl.when(blk == nb - 1)
        def _():
            accumulate(True)

        @pl.when(blk < nb - 1)
        def _():
            accumulate(False)
        # Phantom blocks (blk >= nb, odd nb split over 2 cores) do nothing.
    elif has_phantom:
        @pl.when(blk < nb)
        def _():
            accumulate(False)
    else:
        accumulate(False)


def _mse_none_kernel(p_ref, t_ref, o_ref):
    """Elementwise squared difference (reduction='none')."""
    d = p_ref[...].astype(jnp.float32) - t_ref[...].astype(jnp.float32)
    o_ref[...] = (d * d).astype(o_ref.dtype)


# ---------------------------------------------------------------------------
# Wrapper
# ---------------------------------------------------------------------------

def _mse_xla(pred, target, reduction):
    """Plain-XLA fallback for inputs smaller than one lane row."""
    d = pred.astype(jnp.float32) - target.astype(jnp.float32)
    sq = d * d
    if reduction == "none":
        return sq.astype(pred.dtype)
    total = jnp.sum(sq)
    if reduction == "mean":
        total = total / pred.size
    return total.astype(pred.dtype)


def _plan_reduce(rows, target_rows):
    """Pick (block_rows, num_blocks, num_cores, steps_per_core)."""
    if rows <= target_rows:
        # Single block covering the full row extent (legal even if rows is not
        # a sublane multiple, since the block equals the full array dim).
        return rows, 1, 1, 1
    block_rows = target_rows
    nb = _cdiv(rows, block_rows)
    nc = 2                       # always split across both v7x TensorCores
    steps = _cdiv(nb, nc)
    return block_rows, nb, nc, steps


def mse_loss(pred, target, reduction: str = "mean"):
    """Pallas equivalent of torch.nn.functional.mse_loss."""
    if pred.shape != target.shape:
        raise ValueError("pred/target shapes must match")
    if reduction not in ("mean", "sum", "none"):
        raise ValueError(f"unknown reduction: {reduction}")

    n = int(pred.size)
    itemsize = jnp.dtype(pred.dtype).itemsize
    width = _pick_width(n)
    aligned = (n // width) * width
    rows = aligned // width
    if rows == 0:
        # Fewer than 128 elements: kernel/grid overhead dominates; plain XLA.
        return _mse_xla(pred, target, reduction)

    target_block_bytes, vmem_limit = _chip_budget()
    sub = _sublane_multiple(pred.dtype)
    target_rows = max(sub, (target_block_bytes // (width * itemsize)) // sub * sub)

    p_flat = pred.reshape(-1)
    t_flat = target.reshape(-1)
    if aligned == n:
        p2 = p_flat.reshape(rows, width)
        t2 = t_flat.reshape(rows, width)
    else:
        # TODO(synk): the prefix slice still costs one copy per input for
        # ragged sizes; a 1-D-blocked kernel would make it fully zero-copy.
        p2 = p_flat[:aligned].reshape(rows, width)
        t2 = t_flat[:aligned].reshape(rows, width)

    if reduction == "none":
        block_rows = rows if rows <= target_rows else target_rows
        nb = _cdiv(rows, block_rows)
        spec = pl.BlockSpec((block_rows, width), lambda i: (i, 0))
        out = pl.pallas_call(
            _mse_none_kernel,
            out_shape=jax.ShapeDtypeStruct((rows, width), pred.dtype),
            grid_spec=pltpu.PrefetchScalarGridSpec(
                num_scalar_prefetch=0,
                grid=(nb,),
                in_specs=[spec, spec],
                out_specs=spec,
            ),
            compiler_params=pltpu.CompilerParams(
                dimension_semantics=("parallel",),
                vmem_limit_bytes=vmem_limit),
            cost_estimate=pl.CostEstimate(
                flops=3 * aligned, transcendentals=0,
                bytes_accessed=3 * aligned * itemsize),
        )(p2, t2)
        flat_out = out.reshape(-1)
        if aligned != n:
            dt = (p_flat[aligned:].astype(jnp.float32)
                  - t_flat[aligned:].astype(jnp.float32))
            flat_out = jnp.concatenate([flat_out, (dt * dt).astype(pred.dtype)])
        return flat_out.reshape(pred.shape)

    # reduction in ("mean", "sum")
    block_rows, nb, nc, steps = _plan_reduce(rows, target_rows)
    mask_tail = (rows % block_rows) != 0
    has_phantom = (nc * steps) != nb

    # Clamp phantom block indices so every DMA window stays in bounds; the
    # kernel skips their accumulation with pl.when.
    in_spec = pl.BlockSpec(
        (block_rows, width),
        lambda c, i: (jnp.minimum(c * steps + i, nb - 1), 0))

    partials = pl.pallas_call(
        functools.partial(
            _mse_reduce_kernel, rows=rows, block_rows=block_rows, nb=nb,
            steps=steps, mask_tail=mask_tail, has_phantom=has_phantom),
        out_shape=jax.ShapeDtypeStruct((nc * 8, width), jnp.float32),
        grid_spec=pltpu.PrefetchScalarGridSpec(
            num_scalar_prefetch=0,
            grid=(nc, steps),
            in_specs=[in_spec, in_spec],
            out_specs=pl.BlockSpec((8, width), lambda c, i: (c, 0)),
        ),
        compiler_params=pltpu.CompilerParams(
            dimension_semantics=("parallel", "arbitrary"),
            vmem_limit_bytes=vmem_limit),
        cost_estimate=pl.CostEstimate(
            flops=3 * aligned, transcendentals=0,
            bytes_accessed=2 * aligned * itemsize),
    )(p2, t2)

    # Tiny (<= 4 KiB) cross-lane finalize in plain XLA.
    total = jnp.sum(partials)
    if aligned != n:
        dt = (p_flat[aligned:].astype(jnp.float32)
              - t_flat[aligned:].astype(jnp.float32))
        total = total + jnp.sum(dt * dt)
    if reduction == "mean":
        total = total / n
    return total.astype(pred.dtype)


class MSELossPallas:
    """Mirror of the PyTorch MSELoss module (no parameters)."""

    def __init__(self, reduction: str = "mean"):
        self.reduction = reduction

    def __call__(self, pred, target, threshold=None):
        # `threshold` is unused (kept for API compatibility with the module).
        return mse_loss(pred, target, reduction=self.reduction)


if __name__ == "__main__":
    key = jax.random.PRNGKey(0)
    k1, k2, k3, k4 = jax.random.split(key, 4)

    shape = (2, 4, 16, 16)  # [batch, channels, height, width]
    pred = jax.random.normal(k1, shape, dtype=jnp.float32)
    target = jax.random.normal(k2, shape, dtype=jnp.float32)

    loss_mean = jax.block_until_ready(MSELossPallas("mean")(pred, target))
    loss_sum = jax.block_until_ready(MSELossPallas("sum")(pred, target))
    loss_none = jax.block_until_ready(MSELossPallas("none")(pred, target))

    ref_none = (pred - target) ** 2
    assert jnp.allclose(loss_none, ref_none, rtol=1e-5, atol=1e-5)
    assert jnp.allclose(loss_sum, jnp.sum(ref_none), rtol=1e-5, atol=1e-4)
    assert jnp.allclose(loss_mean, jnp.mean(ref_none), rtol=1e-5, atol=1e-6)

    # Ragged size: exercises the aligned-prefix + XLA-tail stitching and the
    # odd-row single-block accumulate path.
    shape2 = (2, 3, 17, 23)
    pred2 = jax.random.normal(k3, shape2, dtype=jnp.float32)
    target2 = jax.random.normal(k4, shape2, dtype=jnp.float32)
    ref2 = (pred2 - target2) ** 2
    got_mean2 = jax.block_until_ready(mse_loss(pred2, target2, "mean"))
    got_none2 = jax.block_until_ready(mse_loss(pred2, target2, "none"))
    assert jnp.allclose(got_mean2, jnp.mean(ref2), rtol=1e-5, atol=1e-6)
    assert jnp.allclose(got_none2, ref2, rtol=1e-5, atol=1e-5)

    print("KERNEL_OK")
</pallas_src>

<mosaic_0001>
module attributes {stable_mosaic.version = 11 : i64} {
  func.func @_mse_reduce_kernel(%arg0: i32, %arg1: i32, %arg2: memref<8x256xf32, #tpu.memory_space<vmem>>, %arg3: memref<8x256xf32, #tpu.memory_space<vmem>>, %arg4: memref<8x256xf32, #tpu.memory_space<vmem>>) attributes {dimension_semantics = [#tpu.dimension_semantics<parallel>, #tpu.dimension_semantics<arbitrary>], iteration_bounds = array<i64: 1, 1>, scalar_prefetch = 0 : i64, scratch_operands = 0 : i64, tpu.core_type = #tpu.core_type<tc>, window_params = [{transform_indices = @transform_0, window_bounds = array<i64: 8, 256>}, {transform_indices = @transform_1, window_bounds = array<i64: 8, 256>}, {transform_indices = @transform_2, window_bounds = array<i64: 8, 256>}]} {
    %c0_i32 = arith.constant 0 : i32
    %0 = arith.cmpi eq, %arg1, %c0_i32 : i32
    %1 = arith.extui %0 : i1 to i32
    %c0_i32_0 = arith.constant 0 : i32
    %2 = arith.cmpi ne, %1, %c0_i32_0 : i32
    scf.if %2 {
      %cst_8 = arith.constant 0.000000e+00 : f32
      %12 = vector.broadcast %cst_8 : f32 to vector<8x256xf32>
      %c0_9 = arith.constant 0 : index
      %c0_10 = arith.constant 0 : index
      %13 = vector.load %arg4[%c0_9, %c0_10] : memref<8x256xf32, #tpu.memory_space<vmem>>, vector<8x256xf32>
      tpu.vector_store %arg4[%c0_9, %c0_10], %12 {strides = array<i32>} : memref<8x256xf32, #tpu.memory_space<vmem>>, vector<8x256xf32>,
    } else {
    }
    %c0 = arith.constant 0 : index
    %c0_1 = arith.constant 0 : index
    %3 = vector.load %arg2[%c0, %c0_1] : memref<8x256xf32, #tpu.memory_space<vmem>>, vector<8x256xf32>
    %c0_2 = arith.constant 0 : index
    %c0_3 = arith.constant 0 : index
    %4 = vector.load %arg3[%c0_2, %c0_3] : memref<8x256xf32, #tpu.memory_space<vmem>>, vector<8x256xf32>
    %5 = arith.subf %3, %4 : vector<8x256xf32>
    %6 = arith.mulf %5, %5 : vector<8x256xf32>
    %c0_4 = arith.constant 0 : index
    %c0_5 = arith.constant 0 : index
    %7 = vector.load %arg4[%c0_4, %c0_5] : memref<8x256xf32, #tpu.memory_space<vmem>>, vector<8x256xf32>
    %8 = vector.shape_cast %6 : vector<8x256xf32> to vector<1x8x256xf32>
    %cst = arith.constant dense<0.000000e+00> : vector<8x256xf32>
    %9 = vector.multi_reduction <add>, %8, %cst [0] : vector<1x8x256xf32> to vector<8x256xf32>
    %10 = arith.addf %7, %9 : vector<8x256xf32>
    %c0_6 = arith.constant 0 : index
    %c0_7 = arith.constant 0 : index
    %11 = vector.load %arg4[%c0_6, %c0_7] : memref<8x256xf32, #tpu.memory_space<vmem>>, vector<8x256xf32>
    tpu.vector_store %arg4[%c0_6, %c0_7], %10 {strides = array<i32>} : memref<8x256xf32, #tpu.memory_space<vmem>>, vector<8x256xf32>,
    return
  }
  func.func @transform_0(%arg0: i32, %arg1: i32) -> (i32, i32) {
    %c1_i32 = arith.constant 1 : i32
    %0 = arith.muli %arg0, %c1_i32 : i32
    %1 = arith.addi %0, %arg1 : i32
    %c0_i32 = arith.constant 0 : i32
    %2 = arith.minsi %1, %c0_i32 : i32
    %c0_i32_0 = arith.constant 0 : i32
    %c0_i32_1 = arith.constant 0 : i32
    return %2, %c0_i32_0 : i32, i32
  }
  func.func @transform_1(%arg0: i32, %arg1: i32) -> (i32, i32) {
    %c1_i32 = arith.constant 1 : i32
    %0 = arith.muli %arg0, %c1_i32 : i32
    %1 = arith.addi %0, %arg1 : i32
    %c0_i32 = arith.constant 0 : i32
    %2 = arith.minsi %1, %c0_i32 : i32
    %c0_i32_0 = arith.constant 0 : i32
    %c0_i32_1 = arith.constant 0 : i32
    return %2, %c0_i32_0 : i32, i32
  }
  func.func @transform_2(%arg0: i32, %arg1: i32) -> (i32, i32) {
    %c0_i32 = arith.constant 0 : i32
    %c0_i32_0 = arith.constant 0 : i32
    return %arg0, %c0_i32 : i32, i32
  }
}

</mosaic_0001>

<llo_original>
// kernel: tpu_custom_call.1
$region0: #{tpu_custom_call.1}
  #allocation0 [shape = 'u32[]', space=smem, size = 0x4, offset = 0x4, fixed_abs, tag = 'smem constant byte address 0x4 - core index']
  #allocation1 [shape = 'u32[144,128]{1,0:T(1,128)}', space=vmem, size = 0x12000, scoped, tag = 'internal scratch']
  %s0 = inlined_call_operand.hbm [shape: f32[8,256], index: 0, kind: input, shape index: {}]
  %s1 = inlined_call_operand.hbm [shape: f32[8,256], index: 1, kind: input, shape index: {}]
  %s2 = inlined_call_operand.hbm [shape: f32[8,256], index: 2, kind: output, shape index: {}]
  %s3 = sld [smem:[#allocation0]]
  $region30: #{tpu_custom_call.1} parent=0
    _
  %s5 = ssub.s32 1, %s3
  %s6 = scalar_select 0, %s5, %s3
  $region1: #{tpu_custom_call.1} parent=0
    #allocation2 [shape = 'u8[8192]{0}', space=vmem, size = 0x2000, scoped, tag = 'input window, operand 0, single buffered']
    #allocation3 [shape = 's32[1]{0}', space=sflag, size = 0x4, scoped, tag = 'scoped memory for tpu_custom_call.1']
    #allocation4 [shape = 's32[1]{0}', space=sflag, size = 0x4, scoped, tag = 'scoped memory for tpu_custom_call.1']
    #allocation5 [shape = 'u8[8192]{0}', space=vmem, size = 0x2000, scoped, tag = 'input window, operand 1, single buffered']
    #allocation6 [shape = 's32[1]{0}', space=sflag, size = 0x4, scoped, tag = 'scoped memory for tpu_custom_call.1']
    #allocation7 [shape = 'u8[8192]{0}', space=vmem, size = 0x2000, scoped, tag = 'output window, operand 0, single buffered']
    %7 = vsyncpa [#allocation3], 0
    %8 = vsyncpa [#allocation6], 0
    %9 = vsyncpa [#allocation4], 0
    // Predicated region
    $region2: #{tpu_custom_call.1} parent=1 // pred_check
      _
    $region3: #{tpu_custom_call.1} parent=1 // pred_check_branch
      %11 = sbr.rel (0) target = $region5
    $region4: #{tpu_custom_call.1} parent=1 // pred_region
      %s12 = sadd.s32 0, 0
      %p13 = scmp.lt.s32.totalorder %s12, 0
      %s14 = scalar_select %p13, %s12, 0
      %s16 = ssub.s32 256, 256
      %17 = vsyncadd [#allocation3], %s16
      %s18 = smul.addr %s14, 2
      %s19 = smul.addr %s18, 128
      %s20 = scalar_lea.hbm %s0, %s19
      %s22 = sshll.u32 [#allocation2], 4
      %s23 = int_to_ptr.vmem [resolvable:$true] %s22
      %25 = dma.hbm_to_vmem [thread:$0]  %s20, 256, %s23, [#allocation3]
    $region5: #{tpu_custom_call.1} parent=1 // pred_fallthru
      _
    // Predicated region
    $region6: #{tpu_custom_call.1} parent=1 // pred_check
      _
    $region7: #{tpu_custom_call.1} parent=1 // pred_check_branch
      %27 = sbr.rel (0) target = $region9
    $region8: #{tpu_custom_call.1} parent=1 // pred_region
      %s28 = sadd.s32 0, 0
      %p29 = scmp.lt.s32.totalorder %s28, 0
      %s30 = scalar_select %p29, %s28, 0
      %s32 = ssub.s32 256, 256
      %33 = vsyncadd [#allocation6], %s32
      %s34 = smul.addr %s30, 2
      %s35 = smul.addr %s34, 128
      %s36 = scalar_lea.hbm %s1, %s35
      %s38 = sshll.u32 [#allocation5], 4
      %s39 = int_to_ptr.vmem [resolvable:$true] %s38
      %41 = dma.hbm_to_vmem [thread:$0]  %s36, 256, %s39, [#allocation6]
    $region9: #{tpu_custom_call.1} parent=1 // pred_fallthru
      _
    // Predicated region
    $region10: #{tpu_custom_call.1} parent=1 // pred_check
      _
    $region11: #{tpu_custom_call.1} parent=1 // pred_check_branch
      %43 = sbr.rel (0) target = $region13
    $region12: #{tpu_custom_call.1} parent=1 // pred_region
      %44 = dma.done [#allocation3], 256
    $region13: #{tpu_custom_call.1} parent=1 // pred_fallthru
      _
    // Predicated region
    $region14: #{tpu_custom_call.1} parent=1 // pred_check
      _
    $region15: #{tpu_custom_call.1} parent=1 // pred_check_branch
      %46 = sbr.rel (0) target = $region17
    $region16: #{tpu_custom_call.1} parent=1 // pred_region
      %47 = dma.done [#allocation6], 256
    $region17: #{tpu_custom_call.1} parent=1 // pred_fallthru
      _
    %s48 = sadd.s32 0, 0
    %p49 = scmp.lt.s32.totalorder %s48, 0
    %s50 = scalar_select %p49, %s48, 0
    %s51 = sadd.s32 0, 0
    %p52 = scmp.lt.s32.totalorder %s51, 0
    %s53 = scalar_select %p52, %s51, 0
    %p54 = scmp.eq.s32.totalorder 0, 0
    // Predicated region
    $region18: #{tpu_custom_call.1} parent=1 // pred_check
      %p55 = pneg %p54
    $region19: #{tpu_custom_call.1} parent=1 // pred_check_branch
      %57 = sbr.rel (%p55) target = $region21
    $region20: #{tpu_custom_call.1} parent=1 // pred_region
      %58 = vst [vmem:[#allocation7] sm:$0xff] 0.0
      %59 = vst [vmem:[#allocation7 + $0x8] sm:$0xff] 0.0
    $region21: #{tpu_custom_call.1} parent=1 // pred_fallthru
      _
    %v60 = vld [vmem:[#allocation2] sm:$0xff]
    %v61 = vld [vmem:[#allocation2 + $0x8] sm:$0xff]
    %v62 = vld [vmem:[#allocation5] sm:$0xff]
    %v63 = vld [vmem:[#allocation5 + $0x8] sm:$0xff]
    %v64 = vsub.f32 %v60, %v62
    %v65 = vsub.f32 %v61, %v63
    %v66 = vmul.f32 %v64, %v64
    %v67 = vmul.f32 %v65, %v65
    %v68 = vld [vmem:[#allocation7] sm:$0xff]
    %v69 = vld [vmem:[#allocation7 + $0x8] sm:$0xff]
    %v70 = vadd.f32 %v66, 0.0
    %v71 = vadd.f32 %v67, 0.0
    %v72 = vadd.f32 %v68, %v70
    %v73 = vadd.f32 %v69, %v71
    %74 = vst [vmem:[#allocation7] sm:$0xff] %v72
    %75 = vst [vmem:[#allocation7 + $0x8] sm:$0xff] %v73
    // Predicated region
    $region22: #{tpu_custom_call.1} parent=1 // pred_check
      _
    $region23: #{tpu_custom_call.1} parent=1 // pred_check_branch
      %77 = sbr.rel (0) target = $region25
    $region24: #{tpu_custom_call.1} parent=1 // pred_region
      %s79 = ssub.s32 256, 256
      %80 = vsyncadd [#allocation4], %s79
      %s82 = sshll.u32 [#allocation7], 4
      %s83 = int_to_ptr.vmem [resolvable:$true] %s82
      %85 = dma.vmem_to_hbm [thread:$0]  %s83, 256, %s2, [#allocation4]
    $region25: #{tpu_custom_call.1} parent=1 // pred_fallthru
      _
    // Predicated region
    $region26: #{tpu_custom_call.1} parent=1 // pred_check
      _
    $region27: #{tpu_custom_call.1} parent=1 // pred_check_branch
      %87 = sbr.rel (0) target = $region29
    $region28: #{tpu_custom_call.1} parent=1 // pred_region
      %88 = dma.done [#allocation4], 256
    $region29: #{tpu_custom_call.1} parent=1 // pred_fallthru
      _
    %89 = vsyncpa [#allocation3], 1
    %90 = vsyncpa [#allocation6], 1
    %91 = vsyncpa [#allocation4], 1

</llo_original>
